<compile_context>
chip_gen: v5e
topology: v5e:2x2
jax: 0.10.0
libtpu: 0.0.40
codegen_flags: <defaults>
</compile_context>

<pallas_src>
import functools
import math

import numpy as np
import jax
import jax.numpy as jnp
from jax import lax
from jax.experimental import pallas as pl
from jax.experimental.pallas import tpu as pltpu


# ----------------------------------------------------------------------------
# helpers
# ----------------------------------------------------------------------------
def _layernorm(x, gamma, beta, eps=1e-12):
    mu = jnp.mean(x, axis=-1, keepdims=True)
    xc = x - mu
    var = jnp.mean(xc * xc, axis=-1, keepdims=True)
    return xc * lax.rsqrt(var + eps) * gamma + beta


def _rep(shape):
    """BlockSpec for a weight fully replicated across the (batch) grid."""
    return pl.BlockSpec(shape, lambda i, _n=len(shape): (0,) * _n)


# ----------------------------------------------------------------------------
# Selector kernel: linear+LN on Q and K, K'.Q' logits, softmax,
# vectorized topk gumbel-softmax, one batched mask@V matmul.
# ----------------------------------------------------------------------------
def _selector_kernel(q_ref, k_ref, v_ref, g_ref,
                     wq_ref, bq_ref, gq_ref, beq_ref,
                     wk_ref, bk_ref, gk_ref, bek_ref,
                     o_ref, *, tau):
    TB, n, dim = k_ref.shape

    # --- Q' = LayerNorm(Q @ Wq + bq): one MXU push with M = TB rows ----------
    qp = jnp.dot(q_ref[...], wq_ref[...],
                 preferred_element_type=jnp.float32) + bq_ref[...]
    qp = _layernorm(qp, gq_ref[...], beq_ref[...])                 # (TB, dim) f32

    # --- K' = LayerNorm(K @ Wk + bk): batch folded into M (TB*n rows) --------
    k2 = k_ref[...].reshape(TB * n, dim)
    kp = jnp.dot(k2, wk_ref[...],
                 preferred_element_type=jnp.float32) + bk_ref[...]
    kp = _layernorm(kp, gk_ref[...], bek_ref[...]).reshape(TB, n, dim)

    # --- logits_b[i] = <K'_b[i], Q'_b>: VPU multiply + lane reduce ------------
    # (avoids TB degenerate (n, dim) @ (dim, 1) MXU matmuls with N=1)
    logits = jnp.sum(kp * qp[:, None, :], axis=-1)                 # (TB, n) f32
    logits = logits - jnp.max(logits, axis=-1, keepdims=True)
    e = jnp.exp(logits)
    pi = e * pl.reciprocal(jnp.sum(e, axis=-1, keepdims=True), approx=True)

    # --- all topk gumbel-softmax rows at once ---------------------------------
    # Matches F.gumbel_softmax(probs, tau): softmax((probs + g) / tau).
    h = (pi[:, None, :] + g_ref[...]) * (1.0 / tau)                # (TB, topk, n)
    h = h - jnp.max(h, axis=-1, keepdims=True)
    eh = jnp.exp(h)
    y = eh * pl.reciprocal(jnp.sum(eh, axis=-1, keepdims=True), approx=True)

    # --- single batched (topk, n) @ (n, dv) selection matmul ------------------
    sel = lax.dot_general(y.astype(v_ref.dtype), v_ref[...],
                          (((2,), (1,)), ((0,), (0,))),
                          preferred_element_type=jnp.float32)      # (TB, topk, dv)
    o_ref[...] = sel.astype(o_ref.dtype)


def selector_apply(params, Q, K, V, gumbel_noise, *, topk, tau=100.0,
                   mxu_bf16=True, batch_block=None, vmem_limit_bytes=None):
    """Pallas Selector forward.

    Q: (bs, q_dim, 1);  K: (bs, n_select, dim);
    V: (bs, n_select, dim) or (bs, n_select, nfpc, obj_num, obj_dim);
    gumbel_noise: (bs, topk, n_select) standard Gumbel noise.
    """
    bs, n, dim = K.shape
    q_dim = Q.shape[1]
    assert Q.shape == (bs, q_dim, 1)
    assert gumbel_noise.shape == (bs, topk, n)

    q2 = Q[..., 0]                            # (bs, q_dim)
    v_flat = V.reshape(bs, n, -1)
    dv = v_flat.shape[-1]

    # lane-dense output: pad flattened V feature dim to a multiple of 128.
    dv_pad = ((dv + 127) // 128) * 128
    if dv_pad != dv:
        v_flat = jnp.pad(v_flat, ((0, 0), (0, 0), (0, dv_pad - dv)))

    # batch block per grid step (amortize per-step overhead, fill MXU M dim).
    if batch_block is None:
        TB = bs if bs <= 8 else 8             # 8 = sublane count; raise for prod
    else:
        TB = batch_block
    bs_pad = ((bs + TB - 1) // TB) * TB
    if bs_pad != bs:
        q2 = jnp.pad(q2, ((0, bs_pad - bs), (0, 0)))
        K = jnp.pad(K, ((0, bs_pad - bs), (0, 0), (0, 0)))
        v_flat = jnp.pad(v_flat, ((0, bs_pad - bs), (0, 0), (0, 0)))
        gumbel_noise = jnp.pad(gumbel_noise, ((0, bs_pad - bs), (0, 0), (0, 0)))

    # MXU inputs in bf16 (f32 accumulation); LN params / gumbel noise stay f32.
    mxu_dtype = jnp.bfloat16 if mxu_bf16 else jnp.float32
    q2 = q2.astype(mxu_dtype)
    Kc = K.astype(mxu_dtype)
    v_flat = v_flat.astype(mxu_dtype)
    wq = params['wq'].astype(mxu_dtype)
    wk = params['wk'].astype(mxu_dtype)

    kern = functools.partial(_selector_kernel, tau=tau)
    out = pl.pallas_call(
        kern,
        out_shape=jax.ShapeDtypeStruct((bs_pad, topk, dv_pad), jnp.float32),
        grid=(bs_pad // TB,),
        in_specs=[pl.BlockSpec((TB, q_dim), lambda i: (i, 0)),
                  pl.BlockSpec((TB, n, dim), lambda i: (i, 0, 0)),
                  pl.BlockSpec((TB, n, dv_pad), lambda i: (i, 0, 0)),
                  pl.BlockSpec((TB, topk, n), lambda i: (i, 0, 0)),
                  _rep((q_dim, dim)), _rep((1, dim)), _rep((1, dim)), _rep((1, dim)),
                  _rep((dim, dim)), _rep((1, dim)), _rep((1, dim)), _rep((1, dim))],
        out_specs=pl.BlockSpec((TB, topk, dv_pad), lambda i: (i, 0, 0)),
        compiler_params=pltpu.CompilerParams(
            dimension_semantics=("parallel",),
            vmem_limit_bytes=vmem_limit_bytes),
    )(q2, Kc, v_flat, gumbel_noise,
      wq, params['bq'], params['gq'], params['beq'],
      wk, params['bk'], params['gk'], params['bek'])

    out = out[:bs, :, :dv]                    # strip batch / lane padding
    if V.ndim == 3:
        return out                            # (bs, topk, dim)
    obj_num, obj_dim = V.shape[-2], V.shape[-1]
    return out.reshape(bs, -1, obj_num, obj_dim)   # (bs, topk*nfpc, obj_num, obj_dim)


# ----------------------------------------------------------------------------
# pure-JAX reference (for correctness check)
# ----------------------------------------------------------------------------
def selector_reference(params, Q, K, V, gumbel_noise, tau=100.0):
    bs, n, dim = K.shape
    q = Q[..., 0]
    qp = _layernorm(q @ params['wq'] + params['bq'], params['gq'], params['beq'])
    kp = _layernorm(K @ params['wk'] + params['bk'], params['gk'], params['bek'])
    logits = jnp.einsum('bnd,bd->bn', kp, qp)
    pi = jax.nn.softmax(logits, axis=-1)
    y = jax.nn.softmax((pi[:, None, :] + gumbel_noise) / tau, axis=-1)
    v_flat = V.reshape(bs, n, -1)
    sel = jnp.einsum('btn,bnd->btd', y, v_flat)
    if V.ndim == 3:
        return sel
    obj_num, obj_dim = V.shape[-2], V.shape[-1]
    return sel.reshape(bs, -1, obj_num, obj_dim)


# ----------------------------------------------------------------------------
# parameter init (nn.Linear default uniform init; LayerNorm weight=1, bias=0)
# ----------------------------------------------------------------------------
def init_selector_params(key, *, q_dim, dim):
    kqw, kqb, kkw, kkb = jax.random.split(key, 4)

    def linear(kw, kb, fan_in, fan_out):
        bound = 1.0 / math.sqrt(fan_in)
        w = jax.random.uniform(kw, (fan_in, fan_out), jnp.float32, -bound, bound)
        b = jax.random.uniform(kb, (1, fan_out), jnp.float32, -bound, bound)
        return w, b

    wq, bq = linear(kqw, kqb, q_dim, dim)
    wk, bk = linear(kkw, kkb, dim, dim)
    ones = jnp.ones((1, dim), jnp.float32)
    zeros = jnp.zeros((1, dim), jnp.float32)
    return dict(wq=wq, bq=bq, gq=ones, beq=zeros,
                wk=wk, bk=bk, gk=ones, bek=zeros)


# ----------------------------------------------------------------------------
if __name__ == "__main__":
    bs, q_dim, dim = 2, 32, 32
    n_sel, nfpc, obj_num, obj_dim = 4, 2, 3, 32
    topk = 2
    tau = 100.0

    root = jax.random.PRNGKey(0)
    kp, kq, kk, kv, kg1, kg2 = jax.random.split(root, 6)
    params = init_selector_params(kp, q_dim=q_dim, dim=dim)

    Q = jax.random.normal(kq, (bs, q_dim, 1), jnp.float32)
    K = jax.random.normal(kk, (bs, n_sel, dim), jnp.float32)

    # ---- 5-D V path (clip/object selection), bf16 MXU inputs -----------------
    V5 = jax.random.normal(kv, (bs, n_sel, nfpc, obj_num, obj_dim), jnp.float32)
    g5 = jax.random.gumbel(kg1, (bs, topk, n_sel), jnp.float32)
    out5 = selector_apply(params, Q, K, V5, g5, topk=topk, tau=tau, mxu_bf16=True)
    jax.block_until_ready(out5)
    assert out5.shape == (bs, topk * nfpc, obj_num, obj_dim)
    ref5 = selector_reference(params, Q, K, V5, g5, tau=tau)
    np.testing.assert_allclose(np.asarray(out5), np.asarray(ref5),
                               atol=6e-2, rtol=6e-2)

    # ---- 3-D V path (V == K style), f32 MXU inputs, tighter check ------------
    V3 = K
    g3 = jax.random.gumbel(kg2, (bs, topk, n_sel), jnp.float32)
    out3 = selector_apply(params, Q, K, V3, g3, topk=topk, tau=tau, mxu_bf16=False)
    jax.block_until_ready(out3)
    assert out3.shape == (bs, topk, dim)
    ref3 = selector_reference(params, Q, K, V3, g3, tau=tau)
    np.testing.assert_allclose(np.asarray(out3), np.asarray(ref3),
                               atol=2e-2, rtol=2e-2)

    print("KERNEL_OK")
</pallas_src>

<mosaic_0001>
module attributes {stable_mosaic.version = 11 : i64} {
  func.func @_selector_kernel(%arg0: i32, %arg1: memref<2x32xbf16, #tpu.memory_space<vmem>>, %arg2: memref<2x4x32xbf16, #tpu.memory_space<vmem>>, %arg3: memref<2x4x256xbf16, #tpu.memory_space<vmem>>, %arg4: memref<2x2x4xf32, #tpu.memory_space<vmem>>, %arg5: memref<32x32xbf16, #tpu.memory_space<vmem>>, %arg6: memref<1x32xf32, #tpu.memory_space<vmem>>, %arg7: memref<1x32xf32, #tpu.memory_space<vmem>>, %arg8: memref<1x32xf32, #tpu.memory_space<vmem>>, %arg9: memref<32x32xbf16, #tpu.memory_space<vmem>>, %arg10: memref<1x32xf32, #tpu.memory_space<vmem>>, %arg11: memref<1x32xf32, #tpu.memory_space<vmem>>, %arg12: memref<1x32xf32, #tpu.memory_space<vmem>>, %arg13: memref<2x2x256xf32, #tpu.memory_space<vmem>>) attributes {dimension_semantics = [#tpu.dimension_semantics<parallel>], iteration_bounds = array<i64: 1>, scalar_prefetch = 0 : i64, scratch_operands = 0 : i64, tpu.core_type = #tpu.core_type<tc>, window_params = [{transform_indices = @transform_0, window_bounds = array<i64: 2, 32>}, {transform_indices = @transform_1, window_bounds = array<i64: 2, 4, 32>}, {transform_indices = @transform_2, window_bounds = array<i64: 2, 4, 256>}, {transform_indices = @transform_3, window_bounds = array<i64: 2, 2, 4>}, {pipeline_mode = #tpu.pipeline_mode<synchronous>, transform_indices = @transform_4, window_bounds = array<i64: 32, 32>}, {pipeline_mode = #tpu.pipeline_mode<synchronous>, transform_indices = @transform_5, window_bounds = array<i64: 1, 32>}, {pipeline_mode = #tpu.pipeline_mode<synchronous>, transform_indices = @transform_6, window_bounds = array<i64: 1, 32>}, {pipeline_mode = #tpu.pipeline_mode<synchronous>, transform_indices = @transform_7, window_bounds = array<i64: 1, 32>}, {pipeline_mode = #tpu.pipeline_mode<synchronous>, transform_indices = @transform_8, window_bounds = array<i64: 32, 32>}, {pipeline_mode = #tpu.pipeline_mode<synchronous>, transform_indices = @transform_9, window_bounds = array<i64: 1, 32>}, {pipeline_mode = #tpu.pipeline_mode<synchronous>, transform_indices = @transform_10, window_bounds = array<i64: 1, 32>}, {pipeline_mode = #tpu.pipeline_mode<synchronous>, transform_indices = @transform_11, window_bounds = array<i64: 1, 32>}, {transform_indices = @transform_12, window_bounds = array<i64: 2, 2, 256>}]} {
    %c0 = arith.constant 0 : index
    %c0_0 = arith.constant 0 : index
    %0 = vector.load %arg1[%c0, %c0_0] : memref<2x32xbf16, #tpu.memory_space<vmem>>, vector<2x32xbf16>
    %c0_1 = arith.constant 0 : index
    %c0_2 = arith.constant 0 : index
    %1 = vector.load %arg5[%c0_1, %c0_2] : memref<32x32xbf16, #tpu.memory_space<vmem>>, vector<32x32xbf16>
    %cst = arith.constant dense<0.000000e+00> : vector<2x32xf32>
    %2 = tpu.matmul %0, %1, %cst {dimension_numbers = #tpu.dot_dimension_numbers<[1], [0], [0], [1], [0, 0, 1, 1], [], []>} : vector<2x32xbf16>, vector<32x32xbf16>, vector<2x32xf32> -> vector<2x32xf32>
    %c0_3 = arith.constant 0 : index
    %c0_4 = arith.constant 0 : index
    %3 = vector.load %arg6[%c0_3, %c0_4] : memref<1x32xf32, #tpu.memory_space<vmem>>, vector<1x32xf32>
    %4 = vector.broadcast %3 : vector<1x32xf32> to vector<2x32xf32>
    %5 = arith.addf %2, %4 : vector<2x32xf32>
    %c0_5 = arith.constant 0 : index
    %c0_6 = arith.constant 0 : index
    %6 = vector.load %arg7[%c0_5, %c0_6] : memref<1x32xf32, #tpu.memory_space<vmem>>, vector<1x32xf32>
    %c0_7 = arith.constant 0 : index
    %c0_8 = arith.constant 0 : index
    %7 = vector.load %arg8[%c0_7, %c0_8] : memref<1x32xf32, #tpu.memory_space<vmem>>, vector<1x32xf32>
    %cst_9 = arith.constant dense<0.000000e+00> : vector<2xf32>
    %8 = vector.multi_reduction <add>, %5, %cst_9 [1] : vector<2x32xf32> to vector<2xf32>
    %9 = vector.shape_cast %8 : vector<2xf32> to vector<2x1xf32>
    %cst_10 = arith.constant 3.200000e+01 : f32
    %10 = vector.broadcast %cst_10 : f32 to vector<2x1xf32>
    %11 = arith.divf %9, %10 : vector<2x1xf32>
    %12 = vector.broadcast %11 : vector<2x1xf32> to vector<2x32xf32>
    %13 = arith.subf %5, %12 : vector<2x32xf32>
    %14 = arith.mulf %13, %13 : vector<2x32xf32>
    %cst_11 = arith.constant dense<0.000000e+00> : vector<2xf32>
    %15 = vector.multi_reduction <add>, %14, %cst_11 [1] : vector<2x32xf32> to vector<2xf32>
    %16 = vector.shape_cast %15 : vector<2xf32> to vector<2x1xf32>
    %cst_12 = arith.constant 3.200000e+01 : f32
    %17 = vector.broadcast %cst_12 : f32 to vector<2x1xf32>
    %18 = arith.divf %16, %17 : vector<2x1xf32>
    %cst_13 = arith.constant 9.99999996E-13 : f32
    %19 = vector.broadcast %cst_13 : f32 to vector<2x1xf32>
    %20 = arith.addf %18, %19 : vector<2x1xf32>
    %21 = math.rsqrt %20 : vector<2x1xf32>
    %22 = vector.broadcast %21 : vector<2x1xf32> to vector<2x32xf32>
    %23 = arith.mulf %13, %22 : vector<2x32xf32>
    %24 = vector.broadcast %6 : vector<1x32xf32> to vector<2x32xf32>
    %25 = arith.mulf %23, %24 : vector<2x32xf32>
    %26 = vector.broadcast %7 : vector<1x32xf32> to vector<2x32xf32>
    %27 = arith.addf %25, %26 : vector<2x32xf32>
    %c0_14 = arith.constant 0 : index
    %c0_15 = arith.constant 0 : index
    %c0_16 = arith.constant 0 : index
    %28 = vector.load %arg2[%c0_14, %c0_15, %c0_16] : memref<2x4x32xbf16, #tpu.memory_space<vmem>>, vector<2x4x32xbf16>
    %29 = vector.shape_cast %28 : vector<2x4x32xbf16> to vector<8x32xbf16>
    %c0_17 = arith.constant 0 : index
    %c0_18 = arith.constant 0 : index
    %30 = vector.load %arg9[%c0_17, %c0_18] : memref<32x32xbf16, #tpu.memory_space<vmem>>, vector<32x32xbf16>
    %cst_19 = arith.constant dense<0.000000e+00> : vector<8x32xf32>
    %31 = tpu.matmul %29, %30, %cst_19 {dimension_numbers = #tpu.dot_dimension_numbers<[1], [0], [0], [1], [0, 0, 1, 1], [], []>} : vector<8x32xbf16>, vector<32x32xbf16>, vector<8x32xf32> -> vector<8x32xf32>
    %c0_20 = arith.constant 0 : index
    %c0_21 = arith.constant 0 : index
    %32 = vector.load %arg10[%c0_20, %c0_21] : memref<1x32xf32, #tpu.memory_space<vmem>>, vector<1x32xf32>
    %33 = vector.broadcast %32 : vector<1x32xf32> to vector<8x32xf32>
    %34 = arith.addf %31, %33 : vector<8x32xf32>
    %c0_22 = arith.constant 0 : index
    %c0_23 = arith.constant 0 : index
    %35 = vector.load %arg11[%c0_22, %c0_23] : memref<1x32xf32, #tpu.memory_space<vmem>>, vector<1x32xf32>
    %c0_24 = arith.constant 0 : index
    %c0_25 = arith.constant 0 : index
    %36 = vector.load %arg12[%c0_24, %c0_25] : memref<1x32xf32, #tpu.memory_space<vmem>>, vector<1x32xf32>
    %cst_26 = arith.constant dense<0.000000e+00> : vector<8xf32>
    %37 = vector.multi_reduction <add>, %34, %cst_26 [1] : vector<8x32xf32> to vector<8xf32>
    %38 = vector.shape_cast %37 : vector<8xf32> to vector<8x1xf32>
    %cst_27 = arith.constant 3.200000e+01 : f32
    %39 = vector.broadcast %cst_27 : f32 to vector<8x1xf32>
    %40 = arith.divf %38, %39 : vector<8x1xf32>
    %41 = vector.broadcast %40 : vector<8x1xf32> to vector<8x32xf32>
    %42 = arith.subf %34, %41 : vector<8x32xf32>
    %43 = arith.mulf %42, %42 : vector<8x32xf32>
    %cst_28 = arith.constant dense<0.000000e+00> : vector<8xf32>
    %44 = vector.multi_reduction <add>, %43, %cst_28 [1] : vector<8x32xf32> to vector<8xf32>
    %45 = vector.shape_cast %44 : vector<8xf32> to vector<8x1xf32>
    %cst_29 = arith.constant 3.200000e+01 : f32
    %46 = vector.broadcast %cst_29 : f32 to vector<8x1xf32>
    %47 = arith.divf %45, %46 : vector<8x1xf32>
    %cst_30 = arith.constant 9.99999996E-13 : f32
    %48 = vector.broadcast %cst_30 : f32 to vector<8x1xf32>
    %49 = arith.addf %47, %48 : vector<8x1xf32>
    %50 = math.rsqrt %49 : vector<8x1xf32>
    %51 = vector.broadcast %50 : vector<8x1xf32> to vector<8x32xf32>
    %52 = arith.mulf %42, %51 : vector<8x32xf32>
    %53 = vector.broadcast %35 : vector<1x32xf32> to vector<8x32xf32>
    %54 = arith.mulf %52, %53 : vector<8x32xf32>
    %55 = vector.broadcast %36 : vector<1x32xf32> to vector<8x32xf32>
    %56 = arith.addf %54, %55 : vector<8x32xf32>
    %57 = vector.shape_cast %56 : vector<8x32xf32> to vector<2x4x32xf32>
    %58 = vector.shape_cast %27 : vector<2x32xf32> to vector<2x1x32xf32>
    %59 = vector.broadcast %58 : vector<2x1x32xf32> to vector<2x4x32xf32>
    %60 = arith.mulf %57, %59 : vector<2x4x32xf32>
    %cst_31 = arith.constant dense<0.000000e+00> : vector<2x4xf32>
    %61 = vector.multi_reduction <add>, %60, %cst_31 [2] : vector<2x4x32xf32> to vector<2x4xf32>
    %cst_32 = arith.constant dense<0xFF800000> : vector<2xf32>
    %62 = vector.multi_reduction <maximumf>, %61, %cst_32 [1] : vector<2x4xf32> to vector<2xf32>
    %63 = vector.shape_cast %62 : vector<2xf32> to vector<2x1xf32>
    %64 = vector.broadcast %63 : vector<2x1xf32> to vector<2x4xf32>
    %65 = arith.subf %61, %64 : vector<2x4xf32>
    %66 = math.exp %65 : vector<2x4xf32>
    %cst_33 = arith.constant dense<0.000000e+00> : vector<2xf32>
    %67 = vector.multi_reduction <add>, %66, %cst_33 [1] : vector<2x4xf32> to vector<2xf32>
    %68 = vector.shape_cast %67 : vector<2xf32> to vector<2x1xf32>
    %69 = tpu.reciprocal %68 {approx = true} : vector<2x1xf32> -> vector<2x1xf32>
    %70 = vector.broadcast %69 : vector<2x1xf32> to vector<2x4xf32>
    %71 = arith.mulf %66, %70 : vector<2x4xf32>
    %72 = vector.shape_cast %71 : vector<2x4xf32> to vector<2x1x4xf32>
    %c0_34 = arith.constant 0 : index
    %c0_35 = arith.constant 0 : index
    %c0_36 = arith.constant 0 : index
    %73 = vector.load %arg4[%c0_34, %c0_35, %c0_36] : memref<2x2x4xf32, #tpu.memory_space<vmem>>, vector<2x2x4xf32>
    %74 = vector.broadcast %72 : vector<2x1x4xf32> to vector<2x2x4xf32>
    %75 = arith.addf %74, %73 : vector<2x2x4xf32>
    %cst_37 = arith.constant 0.00999999977 : f32
    %76 = vector.broadcast %cst_37 : f32 to vector<2x2x4xf32>
    %77 = arith.mulf %75, %76 : vector<2x2x4xf32>
    %cst_38 = arith.constant dense<0xFF800000> : vector<2x2xf32>
    %78 = vector.multi_reduction <maximumf>, %77, %cst_38 [2] : vector<2x2x4xf32> to vector<2x2xf32>
    %79 = vector.shape_cast %78 : vector<2x2xf32> to vector<2x2x1xf32>
    %80 = vector.broadcast %79 : vector<2x2x1xf32> to vector<2x2x4xf32>
    %81 = arith.subf %77, %80 : vector<2x2x4xf32>
    %82 = math.exp %81 : vector<2x2x4xf32>
    %cst_39 = arith.constant dense<0.000000e+00> : vector<2x2xf32>
    %83 = vector.multi_reduction <add>, %82, %cst_39 [2] : vector<2x2x4xf32> to vector<2x2xf32>
    %84 = vector.shape_cast %83 : vector<2x2xf32> to vector<2x2x1xf32>
    %85 = tpu.reciprocal %84 {approx = true} : vector<2x2x1xf32> -> vector<2x2x1xf32>
    %86 = vector.broadcast %85 : vector<2x2x1xf32> to vector<2x2x4xf32>
    %87 = arith.mulf %82, %86 : vector<2x2x4xf32>
    %88 = arith.truncf %87 : vector<2x2x4xf32> to vector<2x2x4xbf16>
    %c0_40 = arith.constant 0 : index
    %c0_41 = arith.constant 0 : index
    %c0_42 = arith.constant 0 : index
    %89 = vector.load %arg3[%c0_40, %c0_41, %c0_42] : memref<2x4x256xbf16, #tpu.memory_space<vmem>>, vector<2x4x256xbf16>
    %cst_43 = arith.constant dense<0.000000e+00> : vector<2x2x256xf32>
    %90 = tpu.matmul %88, %89, %cst_43 {dimension_numbers = #tpu.dot_dimension_numbers<[2], [1], [1], [2], [0, 0, 0, 1, 1, 2], [0], [0]>} : vector<2x2x4xbf16>, vector<2x4x256xbf16>, vector<2x2x256xf32> -> vector<2x2x256xf32>
    %c0_44 = arith.constant 0 : index
    %c0_45 = arith.constant 0 : index
    %c0_46 = arith.constant 0 : index
    %91 = vector.load %arg13[%c0_44, %c0_45, %c0_46] : memref<2x2x256xf32, #tpu.memory_space<vmem>>, vector<2x2x256xf32>
    tpu.vector_store %arg13[%c0_44, %c0_45, %c0_46], %90 {strides = array<i32>} : memref<2x2x256xf32, #tpu.memory_space<vmem>>, vector<2x2x256xf32>,
    return
  }
  func.func @transform_0(%arg0: i32) -> (i32, i32) {
    %c0_i32 = arith.constant 0 : i32
    %c0_i32_0 = arith.constant 0 : i32
    return %arg0, %c0_i32 : i32, i32
  }
  func.func @transform_1(%arg0: i32) -> (i32, i32, i32) {
    %c0_i32 = arith.constant 0 : i32
    %c0_i32_0 = arith.constant 0 : i32
    %c0_i32_1 = arith.constant 0 : i32
    return %arg0, %c0_i32, %c0_i32_0 : i32, i32, i32
  }
  func.func @transform_2(%arg0: i32) -> (i32, i32, i32) {
    %c0_i32 = arith.constant 0 : i32
    %c0_i32_0 = arith.constant 0 : i32
    %c0_i32_1 = arith.constant 0 : i32
    return %arg0, %c0_i32, %c0_i32_0 : i32, i32, i32
  }
  func.func @transform_3(%arg0: i32) -> (i32, i32, i32) {
    %c0_i32 = arith.constant 0 : i32
    %c0_i32_0 = arith.constant 0 : i32
    %c0_i32_1 = arith.constant 0 : i32
    return %arg0, %c0_i32, %c0_i32_0 : i32, i32, i32
  }
  func.func @transform_4(%arg0: i32) -> (i32, i32) {
    %c0_i32 = arith.constant 0 : i32
    %c0_i32_0 = arith.constant 0 : i32
    %c0_i32_1 = arith.constant 0 : i32
    return %c0_i32, %c0_i32_0 : i32, i32
  }
  func.func @transform_5(%arg0: i32) -> (i32, i32) {
    %c0_i32 = arith.constant 0 : i32
    %c0_i32_0 = arith.constant 0 : i32
    %c0_i32_1 = arith.constant 0 : i32
    return %c0_i32, %c0_i32_0 : i32, i32
  }
  func.func @transform_6(%arg0: i32) -> (i32, i32) {
    %c0_i32 = arith.constant 0 : i32
    %c0_i32_0 = arith.constant 0 : i32
    %c0_i32_1 = arith.constant 0 : i32
    return %c0_i32, %c0_i32_0 : i32, i32
  }
  func.func @transform_7(%arg0: i32) -> (i32, i32) {
    %c0_i32 = arith.constant 0 : i32
    %c0_i32_0 = arith.constant 0 : i32
    %c0_i32_1 = arith.constant 0 : i32
    return %c0_i32, %c0_i32_0 : i32, i32
  }
  func.func @transform_8(%arg0: i32) -> (i32, i32) {
    %c0_i32 = arith.constant 0 : i32
    %c0_i32_0 = arith.constant 0 : i32
    %c0_i32_1 = arith.constant 0 : i32
    return %c0_i32, %c0_i32_0 : i32, i32
  }
  func.func @transform_9(%arg0: i32) -> (i32, i32) {
    %c0_i32 = arith.constant 0 : i32
    %c0_i32_0 = arith.constant 0 : i32
    %c0_i32_1 = arith.constant 0 : i32
    return %c0_i32, %c0_i32_0 : i32, i32
  }
  func.func @transform_10(%arg0: i32) -> (i32, i32) {
    %c0_i32 = arith.constant 0 : i32
    %c0_i32_0 = arith.constant 0 : i32
    %c0_i32_1 = arith.constant 0 : i32
    return %c0_i32, %c0_i32_0 : i32, i32
  }
  func.func @transform_11(%arg0: i32) -> (i32, i32) {
    %c0_i32 = arith.constant 0 : i32
    %c0_i32_0 = arith.constant 0 : i32
    %c0_i32_1 = arith.constant 0 : i32
    return %c0_i32, %c0_i32_0 : i32, i32
  }
  func.func @transform_12(%arg0: i32) -> (i32, i32, i32) {
    %c0_i32 = arith.constant 0 : i32
    %c0_i32_0 = arith.constant 0 : i32
    %c0_i32_1 = arith.constant 0 : i32
    return %arg0, %c0_i32, %c0_i32_0 : i32, i32, i32
  }
}

</mosaic_0001>

<llo_original>
// kernel: tpu_custom_call.1
$region0: #{tpu_custom_call.1}
  #allocation0 [shape = 'u32[]', space=smem, size = 0x4, offset = 0x4, fixed_abs, tag = 'smem constant byte address 0x4 - core index']
  #allocation1 [shape = 'u32[72,128]{1,0:T(1,128)}', space=vmem, size = 0x9000, scoped, tag = 'internal scratch']
  %s0 = inlined_call_operand.hbm [shape: bf16[2,32], index: 0, kind: input, shape index: {}]
  %s1 = inlined_call_operand.hbm [shape: bf16[2,4,32], index: 1, kind: input, shape index: {}]
  %s2 = inlined_call_operand.hbm [shape: bf16[2,4,256], index: 2, kind: input, shape index: {}]
  %s3 = inlined_call_operand.hbm [shape: f32[2,2,4], index: 3, kind: input, shape index: {}]
  %s4 = inlined_call_operand.hbm [shape: bf16[32,32], index: 4, kind: input, shape index: {}]
  %s5 = inlined_call_operand.vmem [shape: f32[1,32], index: 5, kind: input, shape index: {}]
  %s6 = inlined_call_operand.vmem [shape: f32[1,32], index: 6, kind: input, shape index: {}]
  %s7 = inlined_call_operand.vmem [shape: f32[1,32], index: 7, kind: input, shape index: {}]
  %s8 = inlined_call_operand.hbm [shape: bf16[32,32], index: 8, kind: input, shape index: {}]
  %s9 = inlined_call_operand.vmem [shape: f32[1,32], index: 9, kind: input, shape index: {}]
  %s10 = inlined_call_operand.vmem [shape: f32[1,32], index: 10, kind: input, shape index: {}]
  %s11 = inlined_call_operand.vmem [shape: f32[1,32], index: 11, kind: input, shape index: {}]
  %s12 = inlined_call_operand.hbm [shape: f32[2,2,256], index: 12, kind: output, shape index: {}]
  %s13 = sld [smem:[#allocation0]]
  $region82: #{tpu_custom_call.1} parent=0
    _
  %s15 = ssub.s32 1, %s13
  %s16 = scalar_select 0, %s15, %s13
  $region1: #{tpu_custom_call.1} parent=0
    #allocation2 [shape = 'u8[512]{0}', space=vmem, size = 0x400, scoped, tag = 'input window, operand 0, single buffered']
    #allocation3 [shape = 's32[1]{0}', space=sflag, size = 0x4, scoped, tag = 'scoped memory for tpu_custom_call.1']
    #allocation4 [shape = 's32[1]{0}', space=sflag, size = 0x4, scoped, tag = 'scoped memory for tpu_custom_call.1']
    #allocation5 [shape = 'u8[2048]{0}', space=vmem, size = 0x800, scoped, tag = 'input window, operand 1, single buffered']
    #allocation6 [shape = 's32[1]{0}', space=sflag, size = 0x4, scoped, tag = 'scoped memory for tpu_custom_call.1']
    #allocation7 [shape = 'u8[4096]{0}', space=vmem, size = 0x1000, scoped, tag = 'input window, operand 2, single buffered']
    #allocation8 [shape = 'u8[2048]{0}', space=vmem, size = 0x800, scoped, tag = 'input window, operand 3, single buffered']
    #allocation9 [shape = 's32[1]{0}', space=sflag, size = 0x4, scoped, tag = 'scoped memory for tpu_custom_call.1']
    #allocation10 [shape = 'u8[8192]{0}', space=vmem, size = 0x2000, scoped, tag = 'input window, operand 4, single buffered']
    #allocation11 [shape = 'u8[8192]{0}', space=vmem, size = 0x2000, scoped, tag = 'input window, operand 8, single buffered']
    #allocation12 [shape = 's32[1]{0}', space=sflag, size = 0x4, scoped, tag = 'scoped memory for tpu_custom_call.1']
    #allocation13 [shape = 'u8[4096]{0}', space=vmem, size = 0x1000, scoped, tag = 'output window, operand 0, single buffered']
    %17 = vsyncpa [#allocation3], 0
    %18 = vsyncpa [#allocation6], 0
    %19 = vsyncpa [#allocation9], 0
    %20 = vsyncpa [#allocation12], 0
    %21 = vsyncpa [#allocation4], 0
    // Predicated region
    $region2: #{tpu_custom_call.1} parent=1 // pred_check
      _
    $region3: #{tpu_custom_call.1} parent=1 // pred_check_branch
      %23 = sbr.rel (0) target = $region5
    $region4: #{tpu_custom_call.1} parent=1 // pred_region
      %25 = vsyncadd [#allocation3], 0
      %s27 = sshll.u32 %s0, 4
      %s28 = int_to_ptr.hbm [resolvable:$true] %s27
      %s29 = sshll.u32 [#allocation2], 4
      %s30 = int_to_ptr.vmem [resolvable:$true] %s29
      %32 = dma.hbm_to_vmem [thread:$0]  %s28, 16, %s30, [#allocation3]
    $region5: #{tpu_custom_call.1} parent=1 // pred_fallthru
      _
    // Predicated region
    $region6: #{tpu_custom_call.1} parent=1 // pred_check
      _
    $region7: #{tpu_custom_call.1} parent=1 // pred_check_branch
      %34 = sbr.rel (0) target = $region9
    $region8: #{tpu_custom_call.1} parent=1 // pred_region
      %36 = vsyncadd [#allocation6], 0
      %s37 = sshll.u32 %s1, 4
      %s38 = int_to_ptr.hbm [resolvable:$true] %s37
      %s39 = sshll.u32 [#allocation5], 4
      %s40 = int_to_ptr.vmem [resolvable:$true] %s39
      %45 = dma.hbm_to_vmem [thread:$0]  %s38, 64, %s40, [#allocation6], 32, 32, 2
    $region9: #{tpu_custom_call.1} parent=1 // pred_fallthru
      _
    // Predicated region
    $region10: #{tpu_custom_call.1} parent=1 // pred_check
      _
    $region11: #{tpu_custom_call.1} parent=1 // pred_check_branch
      %47 = sbr.rel (0) target = $region13
    $region12: #{tpu_custom_call.1} parent=1 // pred_region
      %49 = vsyncadd [#allocation6], 0
      %s50 = sshll.u32 %s2, 4
      %s51 = int_to_ptr.hbm [resolvable:$true] %s50
      %s52 = sshll.u32 [#allocation7], 4
      %s53 = int_to_ptr.vmem [resolvable:$true] %s52
      %58 = dma.hbm_to_vmem [thread:$0]  %s51, 128, %s53, [#allocation6], 64, 64, 4
    $region13: #{tpu_custom_call.1} parent=1 // pred_fallthru
      _
    // Predicated region
    $region14: #{tpu_custom_call.1} parent=1 // pred_check
      _
    $region15: #{tpu_custom_call.1} parent=1 // pred_check_branch
      %60 = sbr.rel (0) target = $region17
    $region16: #{tpu_custom_call.1} parent=1 // pred_region
      %62 = vsyncadd [#allocation9], 0
      %s63 = sshll.u32 %s3, 4
      %s64 = int_to_ptr.hbm [resolvable:$true] %s63
      %s65 = sshll.u32 [#allocation8], 4
      %s66 = int_to_ptr.vmem [resolvable:$true] %s65
      %71 = dma.hbm_to_vmem [thread:$0]  %s64, 64, %s66, [#allocation9], 32, 32, 2
    $region17: #{tpu_custom_call.1} parent=1 // pred_fallthru
      _
    // Predicated region
    $region18: #{tpu_custom_call.1} parent=1 // pred_check
      _
    $region19: #{tpu_custom_call.1} parent=1 // pred_check_branch
      %73 = sbr.rel (0) target = $region21
    $region20: #{tpu_custom_call.1} parent=1 // pred_region
      %75 = vsyncadd [#allocation9], 0
      %s76 = sshll.u32 %s4, 4
      %s77 = int_to_ptr.hbm [resolvable:$true] %s76
      %s78 = sshll.u32 [#allocation10], 4
      %s79 = int_to_ptr.vmem [resolvable:$true] %s78
      %84 = dma.hbm_to_vmem [thread:$0]  %s77, 256, %s79, [#allocation9], 64, 64, 4
    $region21: #{tpu_custom_call.1} parent=1 // pred_fallthru
      _
    // Predicated region
    $region22: #{tpu_custom_call.1} parent=1 // pred_check
      _
    $region23: #{tpu_custom_call.1} parent=1 // pred_check_branch
      %86 = sbr.rel (0) target = $region25
    $region24: #{tpu_custom_call.1} parent=1 // pred_region
      _
    $region25: #{tpu_custom_call.1} parent=1 // pred_fallthru
      _
    // Predicated region
    $region26: #{tpu_custom_call.1} parent=1 // pred_check
      _
    $region27: #{tpu_custom_call.1} parent=1 // pred_check_branch
      %88 = sbr.rel (0) target = $region29
    $region28: #{tpu_custom_call.1} parent=1 // pred_region
      _
    $region29: #{tpu_custom_call.1} parent=1 // pred_fallthru
      _
    // Predicated region
    $region30: #{tpu_custom_call.1} parent=1 // pred_check
      _
    $region31: #{tpu_custom_call.1} parent=1 // pred_check_branch
      %90 = sbr.rel (0) target = $region33
    $region32: #{tpu_custom_call.1} parent=1 // pred_region
      _
    $region33: #{tpu_custom_call.1} parent=1 // pred_fallthru
      _
    // Predicated region
    $region34: #{tpu_custom_call.1} parent=1 // pred_check
      _
    $region35: #{tpu_custom_call.1} parent=1 // pred_check_branch
      %92 = sbr.rel (0) target = $region37
    $region36: #{tpu_custom_call.1} parent=1 // pred_region
      %94 = vsyncadd [#allocation12], 0
      %s95 = sshll.u32 %s8, 4
      %s96 = int_to_ptr.hbm [resolvable:$true] %s95
      %s97 = sshll.u32 [#allocation11], 4
      %s98 = int_to_ptr.vmem [resolvable:$true] %s97
      %103 = dma.hbm_to_vmem [thread:$0]  %s96, 256, %s98, [#allocation12], 64, 64, 4
    $region37: #{tpu_custom_call.1} parent=1 // pred_fallthru
      _
    // Predicated region
    $region38: #{tpu_custom_call.1} parent=1 // pred_check
      _
    $region39: #{tpu_custom_call.1} parent=1 // pred_check_branch
      %105 = sbr.rel (0) target = $region41
    $region40: #{tpu_custom_call.1} parent=1 // pred_region
      _
    $region41: #{tpu_custom_call.1} parent=1 // pred_fallthru
      _
    // Predicated region
    $region42: #{tpu_custom_call.1} parent=1 // pred_check
      _
    $region43: #{tpu_custom_call.1} parent=1 // pred_check_branch
      %107 = sbr.rel (0) target = $region45
    $region44: #{tpu_custom_call.1} parent=1 // pred_region
      _
    $region45: #{tpu_custom_call.1} parent=1 // pred_fallthru
      _
    // Predicated region
    $region46: #{tpu_custom_call.1} parent=1 // pred_check
      _
    $region47: #{tpu_custom_call.1} parent=1 // pred_check_branch
      %109 = sbr.rel (0) target = $region49
    $region48: #{tpu_custom_call.1} parent=1 // pred_region
      _
    $region49: #{tpu_custom_call.1} parent=1 // pred_fallthru
      _
    // Predicated region
    $region50: #{tpu_custom_call.1} parent=1 // pred_check
      _
    $region51: #{tpu_custom_call.1} parent=1 // pred_check_branch
      %111 = sbr.rel (0) target = $region53
    $region52: #{tpu_custom_call.1} parent=1 // pred_region
      %113 = dma.done [#allocation3], 16
    $region53: #{tpu_custom_call.1} parent=1 // pred_fallthru
      _
    // Predicated region
    $region54: #{tpu_custom_call.1} parent=1 // pred_check
      _
    $region55: #{tpu_custom_call.1} parent=1 // pred_check_branch
      %115 = sbr.rel (0) target = $region57
    $region56: #{tpu_custom_call.1} parent=1 // pred_region
      %117 = dma.done [#allocation6], 64
    $region57: #{tpu_custom_call.1} parent=1 // pred_fallthru
      _
    // Predicated region
    $region58: #{tpu_custom_call.1} parent=1 // pred_check
      _
    $region59: #{tpu_custom_call.1} parent=1 // pred_check_branch
      %119 = sbr.rel (0) target = $region61
    $region60: #{tpu_custom_call.1} parent=1 // pred_region
      %121 = dma.done [#allocation6], 128
    $region61: #{tpu_custom_call.1} parent=1 // pred_fallthru
      _
    // Predicated region
    $region62: #{tpu_custom_call.1} parent=1 // pred_check
      _
    $region63: #{tpu_custom_call.1} parent=1 // pred_check_branch
      %123 = sbr.rel (0) target = $region65
    $region64: #{tpu_custom_call.1} parent=1 // pred_region
      %125 = dma.done [#allocation9], 64
    $region65: #{tpu_custom_call.1} parent=1 // pred_fallthru
      _
    // Predicated region
    $region66: #{tpu_custom_call.1} parent=1 // pred_check
      _
    $region67: #{tpu_custom_call.1} parent=1 // pred_check_branch
      %127 = sbr.rel (0) target = $region69
    $region68: #{tpu_custom_call.1} parent=1 // pred_region
      %129 = dma.done [#allocation9], 256
    $region69: #{tpu_custom_call.1} parent=1 // pred_fallthru
      _
    // Predicated region
    $region70: #{tpu_custom_call.1} parent=1 // pred_check
      _
    $region71: #{tpu_custom_call.1} parent=1 // pred_check_branch
      %131 = sbr.rel (0) target = $region73
    $region72: #{tpu_custom_call.1} parent=1 // pred_region
      %133 = dma.done [#allocation12], 256
    $region73: #{tpu_custom_call.1} parent=1 // pred_fallthru
      _
    %v135 = vld [vmem:[#allocation2] sm:$0x1]
    %v136 = vld [vmem:[#allocation10] sm:$0xf]
    %v137 = vld [vmem:[#allocation10 + $0x4] sm:$0xf]
    %v138 = vld [vmem:[#allocation10 + $0x8] sm:$0xf]
    %v139 = vld [vmem:[#allocation10 + $0xc] sm:$0xf]
    %v140 = vld [vmem:[%s5] sm:$0x1]
    %v142 = vperm.slane %v140, 0
    %v148 = vunpack.c.l.b16 %v136
    %v149 = vunpack.c.l.b16 %v137
    %v150 = vunpack.c.l.b16 %v138
    %v151 = vunpack.c.l.b16 %v139
    %v152 = vpack.c.b16 %v149, %v148
    %v153 = vpack.c.b16 %v151, %v150
    %vm156 = vcmask 261120
    %v158 = vsel %vm156, %v135, 0
    %160 = vmatpush.bf16.msra.mxu0 0
    %161 = vmatpush.bf16.msra.mxu0 0
    %162 = vmatpush.bf16.msra.mxu0 0
    %163 = vmatpush.bf16.msra.mxu0 0
    %164 = vmatpush.bf16.msra.mxu0 0
    %165 = vmatpush.bf16.msra.mxu0 0
    %166 = vmatpush.bf16.msra.mxu0 %v153
    %167 = vmatpush.bf16.msra.mxu0 %v152
    %168 = vmatmul.bf16.gmra.mxu0 %v158
    %v169 = vpop.f32.mrf.mxu0
    %v170 = vadd.f32 %v142, %v169
    %v171 = vpop.f32.mrf.mxu0
    %172 = vdwg.mxu0
    %v173 = vld [vmem:[%s6] sm:$0x1]
    %v174 = vld [vmem:[%s7] sm:$0x1]
    %vm175 = vcmask 254976
    %v176 = vsel %vm175, %v170, 0.0
    %177 = vadd.xlane.f32.xlu0 %v176
    %v178 = vpop.xlane.xlu0 %177
    %v179 = vrcp.pop 32.0
    %v180 = vmul.f32 32.0, %v179
    %v181 = vsub.f32 1.0, %v180
    %v182 = vmul.f32 %v179, %v181
    %v183 = vadd.f32 %v179, %v182
    %vm184 = vweird.f32 %v179
    %v185 = vsel %vm184, %v179, %v183
    %v186 = vmul.f32 %v178, %v185
    %v187 = vsub.f32 %v170, %v186
    %v188 = vmul.f32 %v187, %v187
    %v189 = vsel %vm175, %v188, 0.0
    %190 = vadd.xlane.f32.xlu0 %v189
    %v191 = vpop.xlane.xlu0 %190
    %v192 = vmul.f32 %v191, %v185
    %v193 = vadd.f32 %v192, 1e-12
    %v194 = vrsqrt.pop %v193
    %v195 = vmul.f32 %v194, %v193
    %v196 = vmul.f32 %v195, %v194
    %v197 = vmul.f32 0.5, %v196
    %v198 = vsub.f32 1.5, %v197
    %v199 = vmul.f32 %v194, %v198
    %vm200 = vweird.f32 %v193
    %vm201 = vweird.f32 %v194
    %vm202 = vmor %vm200, %vm201
    %v203 = vsel %vm202, %v194, %v199
    %v204 = vmul.f32 %v187, %v203
    %v206 = vperm.slane %v173, 0
    %v208 = vmul.f32 %v204, %v206
    %v210 = vperm.slane %v174, 0
    %v212 = vadd.f32 %v208, %v210
    %v213 = vld [vmem:[#allocation5] sm:$0x3]
    %v214 = vld [vmem:[#allocation5 + $0x2] sm:$0x3]
    %v215 = vld [vmem:[#allocation11] sm:$0xf]
    %v216 = vld [vmem:[#allocation11 + $0x4] sm:$0xf]
    %v217 = vld [vmem:[#allocation11 + $0x8] sm:$0xf]
    %v218 = vld [vmem:[#allocation11 + $0xc] sm:$0xf]
    %v219 = vld [vmem:[%s9] sm:$0x1]
    %v221 = vperm.slane %v219, 0
    %224 = vst [vmem:[#allocation1] ss:$4 sm:$0xff] %v213
    %s226 = scalar_lea.vmem [#allocation1], 1
    %227 = vst [vmem:[%s226] ss:$4 sm:$0xff] %v214
    %v228 = vld.sshfl [vmem:[#allocation1] sm:$0xff pattern:$0x73625140]
    %v233 = vunpack.c.l.b16 %v215
    %v234 = vunpack.c.l.b16 %v216
    %v235 = vunpack.c.l.b16 %v217
    %v236 = vunpack.c.l.b16 %v218
    %v237 = vpack.c.b16 %v234, %v233
    %v238 = vpack.c.b16 %v236, %v235
    %v241 = vsel %vm156, %v228, 0
    %243 = vmatpush.bf16.msra.mxu0 0
    %244 = vmatpush.bf16.msra.mxu0 0
    %245 = vmatpush.bf16.msra.mxu0 0
    %246 = vmatpush.bf16.msra.mxu0 0
    %247 = vmatpush.bf16.msra.mxu0 0
    %248 = vmatpush.bf16.msra.mxu0 0
    %249 = vmatpush.bf16.msra.mxu0 %v238
    %250 = vmatpush.bf16.msra.mxu0 %v237
    %251 = vmatmul.bf16.gmra.mxu0 %v241
    %v252 = vpop.f32.mrf.mxu0
    %v253 = vadd.f32 %v221, %v252
    %v254 = vpop.f32.mrf.mxu0
    %255 = vdwg.mxu0
    %v256 = vld [vmem:[%s10] sm:$0x1]
    %v257 = vld [vmem:[%s11] sm:$0x1]
    %v258 = vsel %vm156, %v253, 0.0
    %259 = vadd.xlane.f32.xlu0 %v258
    %v260 = vpop.xlane.xlu0 %259
    %v261 = vmul.f32 %v260, %v185
    %v262 = vsub.f32 %v253, %v261
    %v263 = vmul.f32 %v262, %v262
    %v264 = vsel %vm156, %v263, 0.0
    %265 = vadd.xlane.f32.xlu0 %v264
    %v266 = vpop.xlane.xlu0 %265
    %v267 = vmul.f32 %v266, %v185
    %v268 = vadd.f32 %v267, 1e-12
    %v269 = vrsqrt.pop %v268
    %v270 = vmul.f32 %v269, %v268
    %v271 = vmul.f32 %v270, %v269
    %v272 = vmul.f32 0.5, %v271
    %v273 = vsub.f32 1.5, %v272
    %v274 = vmul.f32 %v269, %v273
    %vm275 = vweird.f32 %v268
    %vm276 = vweird.f32 %v269
    %vm277 = vmor %vm275, %vm276
    %v278 = vsel %vm277, %v269, %v274
    %v279 = vmul.f32 %v262, %v278
    %v281 = vperm.slane %v256, 0
    %v283 = vmul.f32 %v279, %v281
    %v285 = vperm.slane %v257, 0
    %v287 = vadd.f32 %v283, %v285
    %v289 = vrot.slane %v287, 4
    %v292 = vrot.slane %v212, 1
    %v293 = vperm.slane %v212, 0
    %v294 = vperm.slane %v292, 0
    %v297 = vmul.f32 %v287, %v293
    %v298 = vmul.f32 %v289, %v294
    %vm299 = vcmask 257024
    %v300 = vsel %vm299, %v297, 0.0
    %301 = vadd.xlane.f32.xlu0 %v300
    %v302 = vpop.xlane.xlu0 %301
    %v303 = vsel %vm299, %v298, 0.0
    %304 = vadd.xlane.f32.xlu0 %v303
    %v305 = vpop.xlane.xlu0 %304
    %v308 = vlaneseq
    %v309 = vand.u32 %v308, 127
    %v310 = vperm.slane %v302, %v309
    %v311 = vperm.slane %v305, %v309
    %vm312 = vcmask 1041409
    %v313 = vsel %vm312, %v311, %v310
    %vm315 = vcmask 25600
    %v316 = vsel %vm315, %v313, -inf
    %317 = vmax.xlane.f32.xlu0 %v316
    %v318 = vpop.xlane.xlu0 %317
    %v320 = vperm.slane %v318, 0
    %v321 = vperm.slane %v318, 1
    %v324 = vsub.f32 %v302, %v320
    %v325 = vsub.f32 %v305, %v321
    %v326 = vmul.f32 %v324, 1.442695
    %v327 = vpow.pop %v326
    %v328 = vmul.f32 %v325, 1.442695
    %v329 = vpow.pop %v328
    %332 = vset.pattern.permute.xlu0 0
    %333 = vperm.xlu0 %332, %v327
    %v334 = vpop.permute.xlu0 %333
    %335 = vset.pattern.permute.xlu0 0
    %336 = vperm.xlu0 %335, %v329
    %v337 = vpop.permute.xlu0 %336
    %v338 = vperm.slane %v334, %v309
    %v339 = vperm.slane %v337, %v309
    %v340 = vsel %vm312, %v339, %v338
    %v342 = vsel %vm315, %v340, 0.0
    %343 = vadd.xlane.f32.xlu0 %v342
    %v344 = vpop.xlane.xlu0 %343
    %v345 = vrcp.pop %v344
    %v347 = vperm.slane %v345, 0
    %v348 = vperm.slane %v345, 1
    %v351 = vmul.f32 %v327, %v347
    %v352 = vmul.f32 %v329, %v348
    %v353 = vld [vmem:[#allocation8] sm:$0x3]
    %v354 = vld [vmem:[#allocation8 + $0x2] sm:$0x3]
    %v357 = vperm.slane %v353, 0
    %v358 = vlaneseq
    %v359 = vshrl.u32 %v358, 7
    %361 = vset.pattern.permute.xlu0 %v359
    %362 = vperm.xlu0 %361, %v357
    %v363 = vpop.permute.xlu0 %362
    %v364 = vperm.slane %v353, 1
    %v365 = vlaneseq
    %v366 = vshrl.u32 %v365, 7
    %368 = vset.pattern.permute.xlu0 %v366
    %369 = vperm.xlu0 %368, %v364
    %v370 = vpop.permute.xlu0 %369
    %v371 = vperm.slane %v354, 0
    %v372 = vlaneseq
    %v373 = vshrl.u32 %v372, 7
    %375 = vset.pattern.permute.xlu0 %v373
    %376 = vperm.xlu0 %375, %v371
    %v377 = vpop.permute.xlu0 %376
    %v378 = vperm.slane %v354, 1
    %v379 = vlaneseq
    %v380 = vshrl.u32 %v379, 7
    %382 = vset.pattern.permute.xlu0 %v380
    %383 = vperm.xlu0 %382, %v378
    %v384 = vpop.permute.xlu0 %383
    %v389 = vadd.f32 %v351, %v363
    %v390 = vadd.f32 %v351, %v370
    %v391 = vadd.f32 %v352, %v377
    %v392 = vadd.f32 %v352, %v384
    %v393 = vmul.f32 %v389, 0.01
    %v394 = vmul.f32 %v390, 0.01
    %v395 = vmul.f32 %v391, 0.01
    %v396 = vmul.f32 %v392, 0.01
    %401 = vset.pattern.permute.xlu0 0
    %402 = vperm.xlu0 %401, %v393
    %v403 = vpop.permute.xlu0 %402
    %404 = vset.pattern.permute.xlu0 0
    %405 = vperm.xlu0 %404, %v394
    %v406 = vpop.permute.xlu0 %405
    %407 = vset.pattern.permute.xlu0 0
    %408 = vperm.xlu0 %407, %v395
    %v409 = vpop.permute.xlu0 %408
    %410 = vset.pattern.permute.xlu0 0
    %411 = vperm.xlu0 %410, %v396
    %v412 = vpop.permute.xlu0 %411
    %v413 = vperm.slane %v403, %v309
    %v414 = vperm.slane %v406, %v309
    %v415 = vperm.slane %v409, %v309
    %v416 = vperm.slane %v412, %v309
    %v417 = vsel %vm312, %v414, %v413
    %v418 = vsel %vm312, %v416, %v415
    %v421 = vsel %vm315, %v417, -inf
    %422 = vmax.xlane.f32.xlu0 %v421
    %v423 = vpop.xlane.xlu0 %422
    %v424 = vsel %vm315, %v418, -inf
    %425 = vmax.xlane.f32.xlu0 %v424
    %v426 = vpop.xlane.xlu0 %425
    %v429 = vperm.slane %v423, 0
    %v430 = vperm.slane %v423, 1
    %v431 = vperm.slane %v426, 0
    %v432 = vperm.slane %v426, 1
    %v437 = vsub.f32 %v393, %v429
    %v438 = vsub.f32 %v394, %v430
    %v439 = vsub.f32 %v395, %v431
    %v440 = vsub.f32 %v396, %v432
    %v441 = vmul.f32 %v437, 1.442695
    %v442 = vpow.pop %v441
    %v443 = vmul.f32 %v438, 1.442695
    %v444 = vpow.pop %v443
    %v445 = vmul.f32 %v439, 1.442695
    %v446 = vpow.pop %v445
    %v447 = vmul.f32 %v440, 1.442695
    %v448 = vpow.pop %v447
    %453 = vset.pattern.permute.xlu0 0
    %454 = vperm.xlu0 %453, %v442
    %v455 = vpop.permute.xlu0 %454
    %456 = vset.pattern.permute.xlu0 0
    %457 = vperm.xlu0 %456, %v444
    %v458 = vpop.permute.xlu0 %457
    %459 = vset.pattern.permute.xlu0 0
    %460 = vperm.xlu0 %459, %v446
    %v461 = vpop.permute.xlu0 %460
    %462 = vset.pattern.permute.xlu0 0
    %463 = vperm.xlu0 %462, %v448
    %v464 = vpop.permute.xlu0 %463
    %v465 = vperm.slane %v455, %v309
    %v466 = vperm.slane %v458, %v309
    %v467 = vperm.slane %v461, %v309
    %v468 = vperm.slane %v464, %v309
    %v469 = vsel %vm312, %v466, %v465
    %v470 = vsel %vm312, %v468, %v467
    %v473 = vsel %vm315, %v469, 0.0
    %474 = vadd.xlane.f32.xlu0 %v473
    %v475 = vpop.xlane.xlu0 %474
    %v476 = vsel %vm315, %v470, 0.0
    %477 = vadd.xlane.f32.xlu0 %v476
    %v478 = vpop.xlane.xlu0 %477
    %v479 = vrcp.pop %v475
    %v480 = vrcp.pop %v478
    %v483 = vperm.slane %v479, 0
    %v484 = vperm.slane %v479, 1
    %v485 = vperm.slane %v480, 0
    %v486 = vperm.slane %v480, 1
    %v491 = vmul.f32 %v442, %v483
    %v492 = vmul.f32 %v444, %v484
    %v493 = vmul.f32 %v446, %v485
    %v494 = vmul.f32 %v448, %v486
    %v495 = vpack.c.bf16 %v491, %v491
    %v496 = vpack.c.bf16 %v492, %v492
    %v497 = vpack.c.bf16 %v493, %v493
    %v498 = vpack.c.bf16 %v494, %v494
    %v499 = vld [vmem:[#allocation7] sm:$0xf]
    %v500 = vld [vmem:[#allocation7 + $0x4] sm:$0xf]
    %v503 = vunpack.c.l.b16 %v495
    %v504 = vunpack.c.l.b16 %v496
    %v505 = vpack.c.b16 %v503, %v503
    %v506 = vpack.c.b16 %v504, %v504
    %v507 = vunpack.c.l.b16 %v505
    %v508 = vunpack.c.l.b16 %v506
    %509 = vset.pattern.permute.xlu0 0
    %510 = vperm.xlu0 %509, %v507
    %v511 = vpop.permute.xlu0 %510
    %512 = vset.pattern.permute.xlu0 0
    %513 = vperm.xlu0 %512, %v508
    %v514 = vpop.permute.xlu0 %513
    %v515 = vperm.slane %v511, %v309
    %v516 = vperm.slane %v514, %v309
    %v517 = vsel %vm312, %v516, %v515
    %v518 = vpack.c.b16 %v517, %v517
    %520 = vst [vmem:[#allocation1] ss:$4 sm:$0xff] %v499
    %v521 = vld.sshfl [vmem:[#allocation1] sm:$0xff pattern:$0x73625140]
    %v522 = vld.sshfl [vmem:[#allocation1 + $0x8] sm:$0xff pattern:$0x73625140]
    %vm523 = vcmask 31744
    %v525 = vsel %vm523, %v518, 0
    %vm527 = vcmask 1041408
    %v528 = vsel %vm527, %v521, 0
    %v530 = vsel %vm527, %v522, 0
    %532 = vmatpush.bf16.msra.mxu0 0
    %533 = vmatpush.bf16.msra.mxu0 0
    %534 = vmatpush.bf16.msra.mxu0 0
    %535 = vmatpush.bf16.msra.mxu0 0
    %536 = vmatpush.bf16.msra.mxu0 0
    %537 = vmatpush.bf16.msra.mxu0 0
    %538 = vmatpush.bf16.msra.mxu0 0
    %539 = vmatpush.bf16.msra.mxu0 %v528
    %540 = vmatmul.bf16.gmra.mxu0 %v525
    %v541 = vpop.f32.mrf.mxu0
    %v542 = vadd.f32 0.0, %v541
    %v543 = vpop.f32.mrf.mxu0
    %544 = vdwg.mxu0
    %545 = vmatpush.bf16.msra.mxu0 0
    %546 = vmatpush.bf16.msra.mxu0 0
    %547 = vmatpush.bf16.msra.mxu0 0
    %548 = vmatpush.bf16.msra.mxu0 0
    %549 = vmatpush.bf16.msra.mxu0 0
    %550 = vmatpush.bf16.msra.mxu0 0
    %551 = vmatpush.bf16.msra.mxu0 0
    %552 = vmatpush.bf16.msra.mxu0 %v530
    %553 = vmatmul.bf16.gmra.mxu0 %v525
    %v554 = vpop.f32.mrf.mxu0
    %v555 = vadd.f32 0.0, %v554
    %v556 = vpop.f32.mrf.mxu0
    %557 = vdwg.mxu0
    %v560 = vunpack.c.l.b16 %v497
    %v561 = vunpack.c.l.b16 %v498
    %v562 = vpack.c.b16 %v560, %v560
    %v563 = vpack.c.b16 %v561, %v561
    %v564 = vunpack.c.l.b16 %v562
    %v565 = vunpack.c.l.b16 %v563
    %566 = vset.pattern.permute.xlu0 0
    %567 = vperm.xlu0 %566, %v564
    %v568 = vpop.permute.xlu0 %567
    %569 = vset.pattern.permute.xlu0 0
    %570 = vperm.xlu0 %569, %v565
    %v571 = vpop.permute.xlu0 %570
    %v572 = vperm.slane %v568, %v309
    %v573 = vperm.slane %v571, %v309
    %v574 = vsel %vm312, %v573, %v572
    %v575 = vpack.c.b16 %v574, %v574
    %577 = vst [vmem:[#allocation1] ss:$4 sm:$0xff] %v500
    %v578 = vld.sshfl [vmem:[#allocation1] sm:$0xff pattern:$0x73625140]
    %v579 = vld.sshfl [vmem:[#allocation1 + $0x8] sm:$0xff pattern:$0x73625140]
    %v581 = vsel %vm523, %v575, 0
    %v583 = vsel %vm527, %v578, 0
    %v585 = vsel %vm527, %v579, 0
    %587 = vmatpush.bf16.msra.mxu0 0
    %588 = vmatpush.bf16.msra.mxu0 0
    %589 = vmatpush.bf16.msra.mxu0 0
    %590 = vmatpush.bf16.msra.mxu0 0
    %591 = vmatpush.bf16.msra.mxu0 0
    %592 = vmatpush.bf16.msra.mxu0 0
    %593 = vmatpush.bf16.msra.mxu0 0
    %594 = vmatpush.bf16.msra.mxu0 %v583
    %595 = vmatmul.bf16.gmra.mxu0 %v581
    %v596 = vpop.f32.mrf.mxu0
    %v597 = vadd.f32 0.0, %v596
    %v598 = vpop.f32.mrf.mxu0
    %599 = vdwg.mxu0
    %600 = vmatpush.bf16.msra.mxu0 0
    %601 = vmatpush.bf16.msra.mxu0 0
    %602 = vmatpush.bf16.msra.mxu0 0
    %603 = vmatpush.bf16.msra.mxu0 0
    %604 = vmatpush.bf16.msra.mxu0 0
    %605 = vmatpush.bf16.msra.mxu0 0
    %606 = vmatpush.bf16.msra.mxu0 0
    %607 = vmatpush.bf16.msra.mxu0 %v585
    %608 = vmatmul.bf16.gmra.mxu0 %v581
    %v609 = vpop.f32.mrf.mxu0
    %v610 = vadd.f32 0.0, %v609
    %v611 = vpop.f32.mrf.mxu0
    %612 = vdwg.mxu0
    %v617 = vrot.slane %v555, 6
    %v618 = vrot.slane %v610, 6
    %v619 = vsel %vm527, %v542, %v617
    %v620 = vsel %vm527, %v597, %v618
    %623 = vst [vmem:[#allocation13] sm:$0xf] %v619
    %624 = vst [vmem:[#allocation13 + $0x4] sm:$0xf] %v620
    // Predicated region
    $region74: #{tpu_custom_call.1} parent=1 // pred_check
      _
    $region75: #{tpu_custom_call.1} parent=1 // pred_check_branch
      %626 = sbr.rel (0) target = $region77
    $region76: #{tpu_custom_call.1} parent=1 // pred_region
      %628 = vsyncadd [#allocation4], 0
      %s629 = sshll.u32 [#allocation13], 4
      %s630 = int_to_ptr.vmem [resolvable:$true] %s629
      %s631 = sshll.u32 %s12, 4
      %s632 = int_to_ptr.hbm [resolvable:$true] %s631
      %637 = dma.vmem_to_hbm [thread:$0]  %s630, 128, %s632, [#allocation4], 64, 64, 4
    $region77: #{tpu_custom_call.1} parent=1 // pred_fallthru
      _
    // Predicated region
    $region78: #{tpu_custom_call.1} parent=1 // pred_check
      _
    $region79: #{tpu_custom_call.1} parent=1 // pred_check_branch
      %639 = sbr.rel (0) target = $region81
    $region80: #{tpu_custom_call.1} parent=1 // pred_region
      %641 = dma.done [#allocation4], 128
    $region81: #{tpu_custom_call.1} parent=1 // pred_fallthru
      _
    %642 = vsyncpa [#allocation3], 1
    %643 = vsyncpa [#allocation6], 1
    %644 = vsyncpa [#allocation9], 1
    %645 = vsyncpa [#allocation12], 1
    %646 = vsyncpa [#allocation4], 1

</llo_original>
